<compile_context>
chip_gen: v5e
topology: v5e:2x2
jax: 0.10.0
libtpu: 0.0.40
codegen_flags: <defaults>
</compile_context>

<pallas_src>
import math

import jax
import jax.numpy as jnp
from jax.experimental import pallas as pl
from jax.experimental.pallas import tpu as pltpu


def _round_up(x, m):
    return ((x + m - 1) // m) * m


# ----------------------------------------------------------------------------
# Kernels
# ----------------------------------------------------------------------------
def _make_block_diag_kernel(num_layers, E, D_out):
    """Ensemble folded onto the lane axis: one lane-dense matmul per layer.

    Refs: x (TB, D_in) bf16, then per layer W_l (K_l, N_l) bf16 / b_l (1, N_l) f32
    (layer 0 concatenated over E, later layers block-diagonal), out (E, TB, D_out).
    """

    def kernel(x_ref, *rest):
        out_ref = rest[-1]
        layer_refs = rest[:-1]

        h = x_ref[...]                                          # (TB, D_in) bf16
        for l in range(num_layers):
            w = layer_refs[2 * l][...]                          # (K_l, N_l) bf16
            b = layer_refs[2 * l + 1][...]                      # (1,  N_l)  f32
            h = jnp.dot(h.astype(jnp.bfloat16), w,
                        preferred_element_type=jnp.float32) + b
            if l < num_layers - 1:
                h = jnp.maximum(h, 0.0)                         # hidden_activation
            # output_activation = identity

        # h is (TB, E*D_out); write each member's lane slice into its (TB, D_out)
        # stripe of the (E, TB, D_out) output block (no post-kernel transpose).
        for e in range(E):
            out_ref[e, :, :] = h[:, e * D_out:(e + 1) * D_out].astype(out_ref.dtype)

    return kernel


def _make_per_member_kernel(num_layers, E):
    """Fallback for large E*H: weights stay (E, K, N); static loop over members."""

    def kernel(x_ref, *rest):
        out_ref = rest[-1]
        layer_refs = rest[:-1]

        x = x_ref[...]                                          # (TB, D_in) bf16
        for e in range(E):
            h = x
            for l in range(num_layers):
                w = layer_refs[2 * l][e]                        # (K_l, N_l) bf16
                b = layer_refs[2 * l + 1][e]                    # (1,  N_l)  f32
                h = jnp.dot(h.astype(jnp.bfloat16), w,
                            preferred_element_type=jnp.float32) + b
                if l < num_layers - 1:
                    h = jnp.maximum(h, 0.0)
            out_ref[e, :, :] = h.astype(out_ref.dtype)

    return kernel


# ----------------------------------------------------------------------------
# Wrapper (normalization fold, weight packing, pallas_call plumbing)
# ----------------------------------------------------------------------------
def ensemble_forward(x, input_mu, input_std, weights, biases,
                     compute_dtype=jnp.bfloat16):
    """Pallas implementation of ParallelizedEnsemble.forward (dim <= 2 input).

    x:         (B, D_in) or (D_in,) float32
    input_mu:  (D_in,)   float32
    input_std: (D_in,)   float32
    weights:   list of (E, D_l, D_{l+1}) float32
    biases:    list of (E, 1,   D_{l+1}) float32
    returns:   (E, B, D_out) float32   (or (E, D_out) for a 1-D input)
    """
    squeeze = (x.ndim == 1)
    if squeeze:
        x = x[None, :]
    # TODO(synk): the dim==3 (per-member input) branch of forward() is not kernelized.
    assert x.ndim == 2

    E = weights[0].shape[0]
    B, D_in = x.shape
    D_out = weights[-1].shape[-1]
    num_layers = len(weights)

    # --- fold input normalization into layer 0 (exact, in f32) -------------
    std_f32 = input_std.astype(jnp.float32)
    inv_std = 1.0 / jnp.where(std_f32 < 1e-12, 1.0, std_f32)           # fit_input_stats clamp
    mu = input_mu.astype(jnp.float32)
    W0 = weights[0].astype(jnp.float32)                                # (E, D_in, H1)
    b0 = biases[0].astype(jnp.float32)                                 # (E, 1, H1)
    W0f = inv_std[None, :, None] * W0
    b0f = b0 - jnp.einsum('d,edh->eh', mu * inv_std, W0)[:, None, :]
    folded_w = [W0f] + [w.astype(jnp.float32) for w in weights[1:]]
    folded_b = [b0f] + [b.astype(jnp.float32) for b in biases[1:]]

    # --- gate block-diagonal packing on one MXU tile ------------------------
    max_width = max(w.shape[2] for w in weights)
    use_block_diag = (E * max_width) <= 256

    packed_ws, packed_bs = [], []
    if use_block_diag:
        # Layer 0: shared input -> concat over E on the output axis.
        H1 = W0f.shape[2]
        packed_ws.append(jnp.transpose(W0f, (1, 0, 2))
                         .reshape(D_in, E * H1).astype(compute_dtype))
        packed_bs.append(b0f[:, 0, :].reshape(1, E * H1))
        # Layers 1..L-1: block-diagonal weights (ensemble on the lane axis).
        for W, b in zip(folded_w[1:], folded_b[1:]):
            _, din, dout = W.shape
            eye = jnp.eye(E, dtype=W.dtype)
            bd = jnp.einsum('eio,ef->eifo', W, eye).reshape(E * din, E * dout)
            packed_ws.append(bd.astype(compute_dtype))
            packed_bs.append(b[:, 0, :].reshape(1, E * dout))
        kernel = _make_block_diag_kernel(num_layers, E, D_out)
    else:
        # Large E*H: keep (E, K, N) resident weights, loop over members in-kernel.
        for W, b in zip(folded_w, folded_b):
            packed_ws.append(W.astype(compute_dtype))
            packed_bs.append(b)
        kernel = _make_per_member_kernel(num_layers, E)

    # --- batch tiling: multiple of 8, remainder-safe, >=2 steps when B>=16 --
    n_steps = max(1, -(-B // 512))
    if B >= 16:
        n_steps = max(n_steps, 2)          # feed both v7x TensorCores
    TB = _round_up(max(1, -(-B // n_steps)), 8)
    B_pad = TB * n_steps
    grid = (n_steps,)

    x_p = x.astype(jnp.bfloat16)           # stream the input in bf16
    if B_pad != B:
        x_p = jnp.pad(x_p, ((0, B_pad - B), (0, 0)))

    # --- cost estimate + VMEM budget ----------------------------------------
    flops = 0
    for Wp in packed_ws:
        sz = 1
        for d in Wp.shape:
            sz *= d
        flops += 2 * B_pad * sz
    resident_bytes = sum(int(a.size) * a.dtype.itemsize
                         for a in packed_ws + packed_bs)
    stream_bytes = 2 * (TB * D_in * 2 + E * TB * D_out * 4)    # double-buffered x / out
    bytes_accessed = (x_p.size * x_p.dtype.itemsize + resident_bytes
                      + E * B_pad * D_out * 4)
    cost = pl.CostEstimate(flops=flops, transcendentals=0,
                           bytes_accessed=bytes_accessed)
    vmem_limit = int(min(56 << 20,
                         max(16 << 20, 2 * resident_bytes + 2 * stream_bytes + (2 << 20))))

    call_args = [x_p]
    for Wp, bp in zip(packed_ws, packed_bs):
        call_args += [Wp, bp]

    def _run(single_buffer_resident):
        def resident_spec(shape):
            nd = len(shape)
            imap = lambda i, _nd=nd: (0,) * _nd
            if single_buffer_resident:
                # Constant index_map -> no need for a second buffer.
                return pl.BlockSpec(shape, imap, pipeline_mode=pl.Buffered(1))
            return pl.BlockSpec(shape, imap)

        in_specs = [pl.BlockSpec((TB, D_in), lambda i: (i, 0))]
        for Wp, bp in zip(packed_ws, packed_bs):
            in_specs.append(resident_spec(Wp.shape))
            in_specs.append(resident_spec(bp.shape))
        out_spec = pl.BlockSpec((E, TB, D_out), lambda i: (0, i, 0))

        return pl.pallas_call(
            kernel,
            out_shape=jax.ShapeDtypeStruct((E, B_pad, D_out), jnp.float32),
            grid_spec=pltpu.PrefetchScalarGridSpec(
                num_scalar_prefetch=0,
                grid=grid,
                in_specs=in_specs,
                out_specs=out_spec),
            compiler_params=pltpu.CompilerParams(
                dimension_semantics=("parallel",),
                vmem_limit_bytes=vmem_limit),
            cost_estimate=cost,
        )(*call_args)

    try:
        out = _run(True)
    except Exception:
        # pl.Buffered(1) not supported by this JAX / libtpu -> default buffering.
        out = _run(False)

    if B_pad != B:
        out = out[:, :B, :]
    if squeeze:
        out = out[:, 0, :]
    return out


# ----------------------------------------------------------------------------
# Deterministic parameter init (mirrors ParallelizedLayer.__init__ semantics)
# ----------------------------------------------------------------------------
def init_ensemble_params(key, ensemble_size, hidden_sizes, input_size, output_size,
                         b_init_value=0.0):
    weights, biases = [], []
    in_size = input_size
    for next_size in list(hidden_sizes) + [output_size]:
        key, sub = jax.random.split(key)
        w_std = 1.0 / (2.0 * math.sqrt(in_size))
        w = jax.random.normal(sub, (ensemble_size, in_size, next_size), jnp.float32)
        w = jnp.fmod(w, 2.0) * w_std                  # torch.fmod(randn, 2) * w_std
        b = jnp.zeros((ensemble_size, 1, next_size), jnp.float32) + b_init_value
        weights.append(w)
        biases.append(b)
        in_size = next_size
    return weights, biases


# ----------------------------------------------------------------------------
# Pure-JAX references for verification
# ----------------------------------------------------------------------------
def ref_forward_f32(x, mu, std, weights, biases):
    """Exact f32 replica of the PyTorch module's forward (dim == 2 branch)."""
    E = weights[0].shape[0]
    h = (x - mu) / std
    h = jnp.broadcast_to(h[None], (E,) + h.shape)
    for W, b in zip(weights[:-1], biases[:-1]):
        h = jnp.maximum(jnp.einsum('ebi,eio->ebo', h, W) + b, 0.0)
    return jnp.einsum('ebi,eio->ebo', h, weights[-1]) + biases[-1]


def ref_forward_mixed(x, mu, std, weights, biases):
    """Reference using the kernel's exact recipe: norm folded into layer 0 (f32),
    bf16 operands with f32 accumulation, f32 bias adds."""
    E = weights[0].shape[0]
    inv_std = 1.0 / jnp.where(std < 1e-12, 1.0, std)
    W0f = inv_std[None, :, None] * weights[0]
    b0f = biases[0] - jnp.einsum('d,edh->eh', mu * inv_std, weights[0])[:, None, :]
    ws = [W0f] + list(weights[1:])
    bs = [b0f] + list(biases[1:])
    h = jnp.broadcast_to(x[None], (E,) + x.shape)
    for l, (W, b) in enumerate(zip(ws, bs)):
        h = jnp.einsum('ebi,eio->ebo',
                       h.astype(jnp.bfloat16), W.astype(jnp.bfloat16),
                       preferred_element_type=jnp.float32) + b
        if l < len(ws) - 1:
            h = jnp.maximum(h, 0.0)
    return h


# ----------------------------------------------------------------------------
# Main
# ----------------------------------------------------------------------------
if __name__ == "__main__":
    # Small, module-consistent shapes: E*H = 4*32 = 128 fills the lane axis exactly.
    ensemble_size = 4
    hidden_sizes = (32, 32)
    input_size = 16
    output_size = 8
    batch = 8

    key = jax.random.PRNGKey(0)
    key, kx, km, ks = jax.random.split(key, 4)

    weights, biases = init_ensemble_params(
        key, ensemble_size, hidden_sizes, input_size, output_size, b_init_value=0.0)

    # Non-trivial normalization stats so the layer-0 fold is actually exercised.
    input_mu = 0.1 * jax.random.normal(km, (input_size,), jnp.float32)
    input_std = 0.5 + jax.random.uniform(ks, (input_size,), jnp.float32)

    x = jax.random.normal(kx, (batch, input_size), jnp.float32)

    # TODO(synk): .sample() (torch.randint elite mixing) and fit_input_stats() are
    # host-side utilities; only forward() is kernelized.
    out = ensemble_forward(x, input_mu, input_std, weights, biases)
    out = jax.block_until_ready(out)

    assert out.shape == (ensemble_size, batch, output_size)

    # Tight check against a reference using the kernel's exact mixed-precision recipe.
    ref_mixed = ref_forward_mixed(x, input_mu, input_std, weights, biases)
    assert jnp.allclose(out, ref_mixed, atol=2e-3, rtol=2e-3), (
        float(jnp.max(jnp.abs(out - ref_mixed))))

    # Looser check against the exact f32 module semantics (bf16 rounding only).
    ref_f32 = ref_forward_f32(x, input_mu, input_std, weights, biases)
    assert jnp.allclose(out, ref_f32, atol=5e-2, rtol=5e-2), (
        float(jnp.max(jnp.abs(out - ref_f32))))

    print("KERNEL_OK")
</pallas_src>

<mosaic_0001>
module attributes {stable_mosaic.version = 11 : i64} {
  func.func @kernel(%arg0: i32, %arg1: memref<8x16xbf16, #tpu.memory_space<vmem>>, %arg2: memref<16x128xbf16, #tpu.memory_space<vmem>>, %arg3: memref<1x128xf32, #tpu.memory_space<vmem>>, %arg4: memref<128x128xbf16, #tpu.memory_space<vmem>>, %arg5: memref<1x128xf32, #tpu.memory_space<vmem>>, %arg6: memref<128x32xbf16, #tpu.memory_space<vmem>>, %arg7: memref<1x32xf32, #tpu.memory_space<vmem>>, %arg8: memref<4x8x8xf32, #tpu.memory_space<vmem>>) attributes {dimension_semantics = [#tpu.dimension_semantics<parallel>], iteration_bounds = array<i64: 1>, scalar_prefetch = 0 : i64, scratch_operands = 0 : i64, tpu.core_type = #tpu.core_type<tc>, window_params = [{transform_indices = @transform_0, window_bounds = array<i64: 8, 16>}, {pipeline_mode = #tpu.pipeline_mode<synchronous>, transform_indices = @transform_1, window_bounds = array<i64: 16, 128>}, {pipeline_mode = #tpu.pipeline_mode<synchronous>, transform_indices = @transform_2, window_bounds = array<i64: 1, 128>}, {pipeline_mode = #tpu.pipeline_mode<synchronous>, transform_indices = @transform_3, window_bounds = array<i64: 128, 128>}, {pipeline_mode = #tpu.pipeline_mode<synchronous>, transform_indices = @transform_4, window_bounds = array<i64: 1, 128>}, {pipeline_mode = #tpu.pipeline_mode<synchronous>, transform_indices = @transform_5, window_bounds = array<i64: 128, 32>}, {pipeline_mode = #tpu.pipeline_mode<synchronous>, transform_indices = @transform_6, window_bounds = array<i64: 1, 32>}, {transform_indices = @transform_7, window_bounds = array<i64: 4, 8, 8>}]} {
    %c0 = arith.constant 0 : index
    %c0_0 = arith.constant 0 : index
    %0 = vector.load %arg1[%c0, %c0_0] : memref<8x16xbf16, #tpu.memory_space<vmem>>, vector<8x16xbf16>
    %c0_1 = arith.constant 0 : index
    %c0_2 = arith.constant 0 : index
    %1 = vector.load %arg2[%c0_1, %c0_2] : memref<16x128xbf16, #tpu.memory_space<vmem>>, vector<16x128xbf16>
    %c0_3 = arith.constant 0 : index
    %c0_4 = arith.constant 0 : index
    %2 = vector.load %arg3[%c0_3, %c0_4] : memref<1x128xf32, #tpu.memory_space<vmem>>, vector<1x128xf32>
    %cst = arith.constant dense<0.000000e+00> : vector<8x128xf32>
    %3 = tpu.matmul %0, %1, %cst {dimension_numbers = #tpu.dot_dimension_numbers<[1], [0], [0], [1], [0, 0, 1, 1], [], []>} : vector<8x16xbf16>, vector<16x128xbf16>, vector<8x128xf32> -> vector<8x128xf32>
    %4 = vector.broadcast %2 : vector<1x128xf32> to vector<8x128xf32>
    %5 = arith.addf %3, %4 : vector<8x128xf32>
    %cst_5 = arith.constant 0.000000e+00 : f32
    %6 = vector.broadcast %cst_5 : f32 to vector<8x128xf32>
    %7 = arith.maximumf %5, %6 : vector<8x128xf32>
    %c0_6 = arith.constant 0 : index
    %c0_7 = arith.constant 0 : index
    %8 = vector.load %arg4[%c0_6, %c0_7] : memref<128x128xbf16, #tpu.memory_space<vmem>>, vector<128x128xbf16>
    %c0_8 = arith.constant 0 : index
    %c0_9 = arith.constant 0 : index
    %9 = vector.load %arg5[%c0_8, %c0_9] : memref<1x128xf32, #tpu.memory_space<vmem>>, vector<1x128xf32>
    %10 = arith.truncf %7 : vector<8x128xf32> to vector<8x128xbf16>
    %cst_10 = arith.constant dense<0.000000e+00> : vector<8x128xf32>
    %11 = tpu.matmul %10, %8, %cst_10 {dimension_numbers = #tpu.dot_dimension_numbers<[1], [0], [0], [1], [0, 0, 1, 1], [], []>} : vector<8x128xbf16>, vector<128x128xbf16>, vector<8x128xf32> -> vector<8x128xf32>
    %12 = vector.broadcast %9 : vector<1x128xf32> to vector<8x128xf32>
    %13 = arith.addf %11, %12 : vector<8x128xf32>
    %cst_11 = arith.constant 0.000000e+00 : f32
    %14 = vector.broadcast %cst_11 : f32 to vector<8x128xf32>
    %15 = arith.maximumf %13, %14 : vector<8x128xf32>
    %c0_12 = arith.constant 0 : index
    %c0_13 = arith.constant 0 : index
    %16 = vector.load %arg6[%c0_12, %c0_13] : memref<128x32xbf16, #tpu.memory_space<vmem>>, vector<128x32xbf16>
    %c0_14 = arith.constant 0 : index
    %c0_15 = arith.constant 0 : index
    %17 = vector.load %arg7[%c0_14, %c0_15] : memref<1x32xf32, #tpu.memory_space<vmem>>, vector<1x32xf32>
    %18 = arith.truncf %15 : vector<8x128xf32> to vector<8x128xbf16>
    %cst_16 = arith.constant dense<0.000000e+00> : vector<8x32xf32>
    %19 = tpu.matmul %18, %16, %cst_16 {dimension_numbers = #tpu.dot_dimension_numbers<[1], [0], [0], [1], [0, 0, 1, 1], [], []>} : vector<8x128xbf16>, vector<128x32xbf16>, vector<8x32xf32> -> vector<8x32xf32>
    %20 = vector.broadcast %17 : vector<1x32xf32> to vector<8x32xf32>
    %21 = arith.addf %19, %20 : vector<8x32xf32>
    %22 = vector.extract_strided_slice %21 {offsets = [0, 0], sizes = [8, 8], strides = [1, 1]} : vector<8x32xf32> to vector<8x8xf32>
    %c0_17 = arith.constant 0 : index
    %c0_18 = arith.constant 0 : index
    %c0_19 = arith.constant 0 : index
    %23 = vector.load %arg8[%c0_17, %c0_18, %c0_19] : memref<4x8x8xf32, #tpu.memory_space<vmem>>, vector<1x8x8xf32>
    %24 = vector.shape_cast %23 : vector<1x8x8xf32> to vector<8x8xf32>
    %25 = vector.shape_cast %22 : vector<8x8xf32> to vector<1x8x8xf32>
    tpu.vector_store %arg8[%c0_17, %c0_18, %c0_19], %25 {strides = array<i32>} : memref<4x8x8xf32, #tpu.memory_space<vmem>>, vector<1x8x8xf32>,
    %26 = vector.extract_strided_slice %21 {offsets = [0, 8], sizes = [8, 8], strides = [1, 1]} : vector<8x32xf32> to vector<8x8xf32>
    %c1 = arith.constant 1 : index
    %c0_20 = arith.constant 0 : index
    %c0_21 = arith.constant 0 : index
    %27 = vector.load %arg8[%c1, %c0_20, %c0_21] : memref<4x8x8xf32, #tpu.memory_space<vmem>>, vector<1x8x8xf32>
    %28 = vector.shape_cast %27 : vector<1x8x8xf32> to vector<8x8xf32>
    %29 = vector.shape_cast %26 : vector<8x8xf32> to vector<1x8x8xf32>
    tpu.vector_store %arg8[%c1, %c0_20, %c0_21], %29 {strides = array<i32>} : memref<4x8x8xf32, #tpu.memory_space<vmem>>, vector<1x8x8xf32>,
    %30 = vector.extract_strided_slice %21 {offsets = [0, 16], sizes = [8, 8], strides = [1, 1]} : vector<8x32xf32> to vector<8x8xf32>
    %c2 = arith.constant 2 : index
    %c0_22 = arith.constant 0 : index
    %c0_23 = arith.constant 0 : index
    %31 = vector.load %arg8[%c2, %c0_22, %c0_23] : memref<4x8x8xf32, #tpu.memory_space<vmem>>, vector<1x8x8xf32>
    %32 = vector.shape_cast %31 : vector<1x8x8xf32> to vector<8x8xf32>
    %33 = vector.shape_cast %30 : vector<8x8xf32> to vector<1x8x8xf32>
    tpu.vector_store %arg8[%c2, %c0_22, %c0_23], %33 {strides = array<i32>} : memref<4x8x8xf32, #tpu.memory_space<vmem>>, vector<1x8x8xf32>,
    %34 = vector.extract_strided_slice %21 {offsets = [0, 24], sizes = [8, 8], strides = [1, 1]} : vector<8x32xf32> to vector<8x8xf32>
    %c3 = arith.constant 3 : index
    %c0_24 = arith.constant 0 : index
    %c0_25 = arith.constant 0 : index
    %35 = vector.load %arg8[%c3, %c0_24, %c0_25] : memref<4x8x8xf32, #tpu.memory_space<vmem>>, vector<1x8x8xf32>
    %36 = vector.shape_cast %35 : vector<1x8x8xf32> to vector<8x8xf32>
    %37 = vector.shape_cast %34 : vector<8x8xf32> to vector<1x8x8xf32>
    tpu.vector_store %arg8[%c3, %c0_24, %c0_25], %37 {strides = array<i32>} : memref<4x8x8xf32, #tpu.memory_space<vmem>>, vector<1x8x8xf32>,
    return
  }
  func.func @transform_0(%arg0: i32) -> (i32, i32) {
    %c0_i32 = arith.constant 0 : i32
    %c0_i32_0 = arith.constant 0 : i32
    return %arg0, %c0_i32 : i32, i32
  }
  func.func @transform_1(%arg0: i32) -> (i32, i32) {
    %c0_i32 = arith.constant 0 : i32
    %c0_i32_0 = arith.constant 0 : i32
    %c0_i32_1 = arith.constant 0 : i32
    return %c0_i32, %c0_i32_0 : i32, i32
  }
  func.func @transform_2(%arg0: i32) -> (i32, i32) {
    %c0_i32 = arith.constant 0 : i32
    %c0_i32_0 = arith.constant 0 : i32
    %c0_i32_1 = arith.constant 0 : i32
    return %c0_i32, %c0_i32_0 : i32, i32
  }
  func.func @transform_3(%arg0: i32) -> (i32, i32) {
    %c0_i32 = arith.constant 0 : i32
    %c0_i32_0 = arith.constant 0 : i32
    %c0_i32_1 = arith.constant 0 : i32
    return %c0_i32, %c0_i32_0 : i32, i32
  }
  func.func @transform_4(%arg0: i32) -> (i32, i32) {
    %c0_i32 = arith.constant 0 : i32
    %c0_i32_0 = arith.constant 0 : i32
    %c0_i32_1 = arith.constant 0 : i32
    return %c0_i32, %c0_i32_0 : i32, i32
  }
  func.func @transform_5(%arg0: i32) -> (i32, i32) {
    %c0_i32 = arith.constant 0 : i32
    %c0_i32_0 = arith.constant 0 : i32
    %c0_i32_1 = arith.constant 0 : i32
    return %c0_i32, %c0_i32_0 : i32, i32
  }
  func.func @transform_6(%arg0: i32) -> (i32, i32) {
    %c0_i32 = arith.constant 0 : i32
    %c0_i32_0 = arith.constant 0 : i32
    %c0_i32_1 = arith.constant 0 : i32
    return %c0_i32, %c0_i32_0 : i32, i32
  }
  func.func @transform_7(%arg0: i32) -> (i32, i32, i32) {
    %c0_i32 = arith.constant 0 : i32
    %c0_i32_0 = arith.constant 0 : i32
    %c0_i32_1 = arith.constant 0 : i32
    return %c0_i32, %arg0, %c0_i32_0 : i32, i32, i32
  }
}

module attributes {stable_mosaic.version = 11 : i64} {
  func.func @kernel(%arg0: i32, %arg1: memref<8x16xbf16, #tpu.memory_space<vmem>>, %arg2: memref<16x128xbf16, #tpu.memory_space<vmem>>, %arg3: memref<1x128xf32, #tpu.memory_space<vmem>>, %arg4: memref<128x128xbf16, #tpu.memory_space<vmem>>, %arg5: memref<1x128xf32, #tpu.memory_space<vmem>>, %arg6: memref<128x32xbf16, #tpu.memory_space<vmem>>, %arg7: memref<1x32xf32, #tpu.memory_space<vmem>>, %arg8: memref<4x8x8xf32, #tpu.memory_space<vmem>>) attributes {dimension_semantics = [#tpu.dimension_semantics<parallel>], iteration_bounds = array<i64: 1>, scalar_prefetch = 0 : i64, scratch_operands = 0 : i64, tpu.core_type = #tpu.core_type<tc>, window_params = [{transform_indices = @transform_0, window_bounds = array<i64: 8, 16>}, {pipeline_mode = #tpu.pipeline_mode<synchronous>, transform_indices = @transform_1, window_bounds = array<i64: 16, 128>}, {pipeline_mode = #tpu.pipeline_mode<synchronous>, transform_indices = @transform_2, window_bounds = array<i64: 1, 128>}, {pipeline_mode = #tpu.pipeline_mode<synchronous>, transform_indices = @transform_3, window_bounds = array<i64: 128, 128>}, {pipeline_mode = #tpu.pipeline_mode<synchronous>, transform_indices = @transform_4, window_bounds = array<i64: 1, 128>}, {pipeline_mode = #tpu.pipeline_mode<synchronous>, transform_indices = @transform_5, window_bounds = array<i64: 128, 32>}, {pipeline_mode = #tpu.pipeline_mode<synchronous>, transform_indices = @transform_6, window_bounds = array<i64: 1, 32>}, {transform_indices = @transform_7, window_bounds = array<i64: 4, 8, 8>}]} {
    %c0 = arith.constant 0 : index
    %c0_0 = arith.constant 0 : index
    %0 = vector.load %arg1[%c0, %c0_0] : memref<8x16xbf16, #tpu.memory_space<vmem>>, vector<8x16xbf16>
    %c0_1 = arith.constant 0 : index
    %c0_2 = arith.constant 0 : index
    %1 = vector.load %arg2[%c0_1, %c0_2] : memref<16x128xbf16, #tpu.memory_space<vmem>>, vector<16x128xbf16>
    %c0_3 = arith.constant 0 : index
    %c0_4 = arith.constant 0 : index
    %2 = vector.load %arg3[%c0_3, %c0_4] : memref<1x128xf32, #tpu.memory_space<vmem>>, vector<1x128xf32>
    %cst = arith.constant dense<0.000000e+00> : vector<8x128xf32>
    %3 = tpu.matmul %0, %1, %cst {dimension_numbers = #tpu.dot_dimension_numbers<[1], [0], [0], [1], [0, 0, 1, 1], [], []>} : vector<8x16xbf16>, vector<16x128xbf16>, vector<8x128xf32> -> vector<8x128xf32>
    %4 = vector.broadcast %2 : vector<1x128xf32> to vector<8x128xf32>
    %5 = arith.addf %3, %4 : vector<8x128xf32>
    %cst_5 = arith.constant 0.000000e+00 : f32
    %6 = vector.broadcast %cst_5 : f32 to vector<8x128xf32>
    %7 = arith.maximumf %5, %6 : vector<8x128xf32>
    %c0_6 = arith.constant 0 : index
    %c0_7 = arith.constant 0 : index
    %8 = vector.load %arg4[%c0_6, %c0_7] : memref<128x128xbf16, #tpu.memory_space<vmem>>, vector<128x128xbf16>
    %c0_8 = arith.constant 0 : index
    %c0_9 = arith.constant 0 : index
    %9 = vector.load %arg5[%c0_8, %c0_9] : memref<1x128xf32, #tpu.memory_space<vmem>>, vector<1x128xf32>
    %10 = arith.truncf %7 : vector<8x128xf32> to vector<8x128xbf16>
    %cst_10 = arith.constant dense<0.000000e+00> : vector<8x128xf32>
    %11 = tpu.matmul %10, %8, %cst_10 {dimension_numbers = #tpu.dot_dimension_numbers<[1], [0], [0], [1], [0, 0, 1, 1], [], []>} : vector<8x128xbf16>, vector<128x128xbf16>, vector<8x128xf32> -> vector<8x128xf32>
    %12 = vector.broadcast %9 : vector<1x128xf32> to vector<8x128xf32>
    %13 = arith.addf %11, %12 : vector<8x128xf32>
    %cst_11 = arith.constant 0.000000e+00 : f32
    %14 = vector.broadcast %cst_11 : f32 to vector<8x128xf32>
    %15 = arith.maximumf %13, %14 : vector<8x128xf32>
    %c0_12 = arith.constant 0 : index
    %c0_13 = arith.constant 0 : index
    %16 = vector.load %arg6[%c0_12, %c0_13] : memref<128x32xbf16, #tpu.memory_space<vmem>>, vector<128x32xbf16>
    %c0_14 = arith.constant 0 : index
    %c0_15 = arith.constant 0 : index
    %17 = vector.load %arg7[%c0_14, %c0_15] : memref<1x32xf32, #tpu.memory_space<vmem>>, vector<1x32xf32>
    %18 = arith.truncf %15 : vector<8x128xf32> to vector<8x128xbf16>
    %cst_16 = arith.constant dense<0.000000e+00> : vector<8x32xf32>
    %19 = tpu.matmul %18, %16, %cst_16 {dimension_numbers = #tpu.dot_dimension_numbers<[1], [0], [0], [1], [0, 0, 1, 1], [], []>} : vector<8x128xbf16>, vector<128x32xbf16>, vector<8x32xf32> -> vector<8x32xf32>
    %20 = vector.broadcast %17 : vector<1x32xf32> to vector<8x32xf32>
    %21 = arith.addf %19, %20 : vector<8x32xf32>
    %22 = vector.extract_strided_slice %21 {offsets = [0, 0], sizes = [8, 8], strides = [1, 1]} : vector<8x32xf32> to vector<8x8xf32>
    %c0_17 = arith.constant 0 : index
    %c0_18 = arith.constant 0 : index
    %c0_19 = arith.constant 0 : index
    %23 = vector.load %arg8[%c0_17, %c0_18, %c0_19] : memref<4x8x8xf32, #tpu.memory_space<vmem>>, vector<1x8x8xf32>
    %24 = vector.shape_cast %23 : vector<1x8x8xf32> to vector<8x8xf32>
    %25 = vector.shape_cast %22 : vector<8x8xf32> to vector<1x8x8xf32>
    tpu.vector_store %arg8[%c0_17, %c0_18, %c0_19], %25 {strides = array<i32>} : memref<4x8x8xf32, #tpu.memory_space<vmem>>, vector<1x8x8xf32>,
    %26 = vector.extract_strided_slice %21 {offsets = [0, 8], sizes = [8, 8], strides = [1, 1]} : vector<8x32xf32> to vector<8x8xf32>
    %c1 = arith.constant 1 : index
    %c0_20 = arith.constant 0 : index
    %c0_21 = arith.constant 0 : index
    %27 = vector.load %arg8[%c1, %c0_20, %c0_21] : memref<4x8x8xf32, #tpu.memory_space<vmem>>, vector<1x8x8xf32>
    %28 = vector.shape_cast %27 : vector<1x8x8xf32> to vector<8x8xf32>
    %29 = vector.shape_cast %26 : vector<8x8xf32> to vector<1x8x8xf32>
    tpu.vector_store %arg8[%c1, %c0_20, %c0_21], %29 {strides = array<i32>} : memref<4x8x8xf32, #tpu.memory_space<vmem>>, vector<1x8x8xf32>,
    %30 = vector.extract_strided_slice %21 {offsets = [0, 16], sizes = [8, 8], strides = [1, 1]} : vector<8x32xf32> to vector<8x8xf32>
    %c2 = arith.constant 2 : index
    %c0_22 = arith.constant 0 : index
    %c0_23 = arith.constant 0 : index
    %31 = vector.load %arg8[%c2, %c0_22, %c0_23] : memref<4x8x8xf32, #tpu.memory_space<vmem>>, vector<1x8x8xf32>
    %32 = vector.shape_cast %31 : vector<1x8x8xf32> to vector<8x8xf32>
    %33 = vector.shape_cast %30 : vector<8x8xf32> to vector<1x8x8xf32>
    tpu.vector_store %arg8[%c2, %c0_22, %c0_23], %33 {strides = array<i32>} : memref<4x8x8xf32, #tpu.memory_space<vmem>>, vector<1x8x8xf32>,
    %34 = vector.extract_strided_slice %21 {offsets = [0, 24], sizes = [8, 8], strides = [1, 1]} : vector<8x32xf32> to vector<8x8xf32>
    %c3 = arith.constant 3 : index
    %c0_24 = arith.constant 0 : index
    %c0_25 = arith.constant 0 : index
    %35 = vector.load %arg8[%c3, %c0_24, %c0_25] : memref<4x8x8xf32, #tpu.memory_space<vmem>>, vector<1x8x8xf32>
    %36 = vector.shape_cast %35 : vector<1x8x8xf32> to vector<8x8xf32>
    %37 = vector.shape_cast %34 : vector<8x8xf32> to vector<1x8x8xf32>
    tpu.vector_store %arg8[%c3, %c0_24, %c0_25], %37 {strides = array<i32>} : memref<4x8x8xf32, #tpu.memory_space<vmem>>, vector<1x8x8xf32>,
    return
  }
  func.func @transform_0(%arg0: i32) -> (i32, i32) {
    %c0_i32 = arith.constant 0 : i32
    %c0_i32_0 = arith.constant 0 : i32
    return %arg0, %c0_i32 : i32, i32
  }
  func.func @transform_1(%arg0: i32) -> (i32, i32) {
    %c0_i32 = arith.constant 0 : i32
    %c0_i32_0 = arith.constant 0 : i32
    %c0_i32_1 = arith.constant 0 : i32
    return %c0_i32, %c0_i32_0 : i32, i32
  }
  func.func @transform_2(%arg0: i32) -> (i32, i32) {
    %c0_i32 = arith.constant 0 : i32
    %c0_i32_0 = arith.constant 0 : i32
    %c0_i32_1 = arith.constant 0 : i32
    return %c0_i32, %c0_i32_0 : i32, i32
  }
  func.func @transform_3(%arg0: i32) -> (i32, i32) {
    %c0_i32 = arith.constant 0 : i32
    %c0_i32_0 = arith.constant 0 : i32
    %c0_i32_1 = arith.constant 0 : i32
    return %c0_i32, %c0_i32_0 : i32, i32
  }
  func.func @transform_4(%arg0: i32) -> (i32, i32) {
    %c0_i32 = arith.constant 0 : i32
    %c0_i32_0 = arith.constant 0 : i32
    %c0_i32_1 = arith.constant 0 : i32
    return %c0_i32, %c0_i32_0 : i32, i32
  }
  func.func @transform_5(%arg0: i32) -> (i32, i32) {
    %c0_i32 = arith.constant 0 : i32
    %c0_i32_0 = arith.constant 0 : i32
    %c0_i32_1 = arith.constant 0 : i32
    return %c0_i32, %c0_i32_0 : i32, i32
  }
  func.func @transform_6(%arg0: i32) -> (i32, i32) {
    %c0_i32 = arith.constant 0 : i32
    %c0_i32_0 = arith.constant 0 : i32
    %c0_i32_1 = arith.constant 0 : i32
    return %c0_i32, %c0_i32_0 : i32, i32
  }
  func.func @transform_7(%arg0: i32) -> (i32, i32, i32) {
    %c0_i32 = arith.constant 0 : i32
    %c0_i32_0 = arith.constant 0 : i32
    %c0_i32_1 = arith.constant 0 : i32
    return %c0_i32, %arg0, %c0_i32_0 : i32, i32, i32
  }
}

</mosaic_0001>

<llo_original>
// kernel: tpu_custom_call.1
$region0: #{tpu_custom_call.1}
  #allocation0 [shape = 'u32[]', space=smem, size = 0x4, offset = 0x4, fixed_abs, tag = 'smem constant byte address 0x4 - core index']
  #allocation1 [shape = 'u32[72,128]{1,0:T(1,128)}', space=vmem, size = 0x9000, scoped, tag = 'internal scratch']
  %s0 = inlined_call_operand.vmem [shape: bf16[8,16], index: 0, kind: input, shape index: {}]
  %s1 = inlined_call_operand.vmem [shape: bf16[16,128], index: 1, kind: input, shape index: {}]
  %s2 = inlined_call_operand.vmem [shape: f32[1,128], index: 2, kind: input, shape index: {}]
  %s3 = inlined_call_operand.vmem [shape: bf16[128,128], index: 3, kind: input, shape index: {}]
  %s4 = inlined_call_operand.vmem [shape: f32[1,128], index: 4, kind: input, shape index: {}]
  %s5 = inlined_call_operand.vmem [shape: bf16[128,32], index: 5, kind: input, shape index: {}]
  %s6 = inlined_call_operand.vmem [shape: f32[1,32], index: 6, kind: input, shape index: {}]
  %s7 = inlined_call_operand.hbm [shape: f32[4,8,8], index: 7, kind: output, shape index: {}]
  %s8 = sld [smem:[#allocation0]]
  $region38: #{tpu_custom_call.1} parent=0
    _
  %s10 = ssub.s32 1, %s8
  %s11 = scalar_select 0, %s10, %s8
  $region1: #{tpu_custom_call.1} parent=0
    #allocation2 [shape = 'u8[16384]{0}', space=vmem, size = 0x4000, scoped, tag = 'output window, operand 0, single buffered']
    #allocation3 [shape = 's32[1]{0}', space=sflag, size = 0x4, scoped, tag = 'scoped memory for tpu_custom_call.1']
    %12 = vsyncpa [#allocation3], 0
    // Predicated region
    $region2: #{tpu_custom_call.1} parent=1 // pred_check
      _
    $region3: #{tpu_custom_call.1} parent=1 // pred_check_branch
      %14 = sbr.rel (0) target = $region5
    $region4: #{tpu_custom_call.1} parent=1 // pred_region
      _
    $region5: #{tpu_custom_call.1} parent=1 // pred_fallthru
      _
    // Predicated region
    $region6: #{tpu_custom_call.1} parent=1 // pred_check
      _
    $region7: #{tpu_custom_call.1} parent=1 // pred_check_branch
      %16 = sbr.rel (0) target = $region9
    $region8: #{tpu_custom_call.1} parent=1 // pred_region
      _
    $region9: #{tpu_custom_call.1} parent=1 // pred_fallthru
      _
    // Predicated region
    $region10: #{tpu_custom_call.1} parent=1 // pred_check
      _
    $region11: #{tpu_custom_call.1} parent=1 // pred_check_branch
      %18 = sbr.rel (0) target = $region13
    $region12: #{tpu_custom_call.1} parent=1 // pred_region
      _
    $region13: #{tpu_custom_call.1} parent=1 // pred_fallthru
      _
    // Predicated region
    $region14: #{tpu_custom_call.1} parent=1 // pred_check
      _
    $region15: #{tpu_custom_call.1} parent=1 // pred_check_branch
      %20 = sbr.rel (0) target = $region17
    $region16: #{tpu_custom_call.1} parent=1 // pred_region
      _
    $region17: #{tpu_custom_call.1} parent=1 // pred_fallthru
      _
    // Predicated region
    $region18: #{tpu_custom_call.1} parent=1 // pred_check
      _
    $region19: #{tpu_custom_call.1} parent=1 // pred_check_branch
      %22 = sbr.rel (0) target = $region21
    $region20: #{tpu_custom_call.1} parent=1 // pred_region
      _
    $region21: #{tpu_custom_call.1} parent=1 // pred_fallthru
      _
    // Predicated region
    $region22: #{tpu_custom_call.1} parent=1 // pred_check
      _
    $region23: #{tpu_custom_call.1} parent=1 // pred_check_branch
      %24 = sbr.rel (0) target = $region25
    $region24: #{tpu_custom_call.1} parent=1 // pred_region
      _
    $region25: #{tpu_custom_call.1} parent=1 // pred_fallthru
      _
    // Predicated region
    $region26: #{tpu_custom_call.1} parent=1 // pred_check
      _
    $region27: #{tpu_custom_call.1} parent=1 // pred_check_branch
      %26 = sbr.rel (0) target = $region29
    $region28: #{tpu_custom_call.1} parent=1 // pred_region
      _
    $region29: #{tpu_custom_call.1} parent=1 // pred_fallthru
      _
    %v28 = vld [vmem:[%s0] sm:$0xf]
    %v29 = vld [vmem:[%s1] sm:$0xf]
    %v30 = vld [vmem:[%s1 + $0x4] sm:$0xf]
    %v31 = vld [vmem:[%s2] sm:$0x1]
    %v33 = vperm.slane %v31, 0
    %v37 = vunpack.c.l.b16 %v29
    %v38 = vunpack.c.l.b16 %v30
    %v39 = vpack.c.b16 %v38, %v37
    %vm41 = vcmask 130048
    %v43 = vsel %vm41, %v28, 0
    %45 = vmatpush.bf16.msra.mxu0 0
    %46 = vmatpush.bf16.msra.mxu0 0
    %47 = vmatpush.bf16.msra.mxu0 0
    %48 = vmatpush.bf16.msra.mxu0 0
    %49 = vmatpush.bf16.msra.mxu0 0
    %50 = vmatpush.bf16.msra.mxu0 0
    %51 = vmatpush.bf16.msra.mxu0 0
    %52 = vmatpush.bf16.msra.mxu0 %v39
    %53 = vmatmul.bf16.gmra.mxu0 %v43
    %v54 = vpop.f32.mrf.mxu0
    %v55 = vadd.f32 %v33, %v54
    %v56 = vpop.f32.mrf.mxu0
    %57 = vdwg.mxu0
    %v58 = vmax.f32 %v55, 0.0
    %v59 = vld [vmem:[%s3] sm:$0xf]
    %v60 = vld [vmem:[%s3 + $0x4] sm:$0xf]
    %v61 = vld [vmem:[%s3 + $0x8] sm:$0xf]
    %v62 = vld [vmem:[%s3 + $0xc] sm:$0xf]
    %v63 = vld [vmem:[%s3 + $0x10] sm:$0xf]
    %v64 = vld [vmem:[%s3 + $0x14] sm:$0xf]
    %v65 = vld [vmem:[%s3 + $0x18] sm:$0xf]
    %v66 = vld [vmem:[%s3 + $0x1c] sm:$0xf]
    %v67 = vld [vmem:[%s3 + $0x20] sm:$0xf]
    %v68 = vld [vmem:[%s3 + $0x24] sm:$0xf]
    %v69 = vld [vmem:[%s3 + $0x28] sm:$0xf]
    %v70 = vld [vmem:[%s3 + $0x2c] sm:$0xf]
    %v71 = vld [vmem:[%s3 + $0x30] sm:$0xf]
    %v72 = vld [vmem:[%s3 + $0x34] sm:$0xf]
    %v73 = vld [vmem:[%s3 + $0x38] sm:$0xf]
    %v74 = vld [vmem:[%s3 + $0x3c] sm:$0xf]
    %v75 = vld [vmem:[%s4] sm:$0x1]
    %v76 = vpack.c.bf16 %v58, %v58
    %v78 = vperm.slane %v75, 0
    %v96 = vunpack.c.l.b16 %v59
    %v97 = vunpack.c.l.b16 %v60
    %v98 = vunpack.c.l.b16 %v61
    %v99 = vunpack.c.l.b16 %v62
    %v100 = vunpack.c.l.b16 %v63
    %v101 = vunpack.c.l.b16 %v64
    %v102 = vunpack.c.l.b16 %v65
    %v103 = vunpack.c.l.b16 %v66
    %v104 = vunpack.c.l.b16 %v67
    %v105 = vunpack.c.l.b16 %v68
    %v106 = vunpack.c.l.b16 %v69
    %v107 = vunpack.c.l.b16 %v70
    %v108 = vunpack.c.l.b16 %v71
    %v109 = vunpack.c.l.b16 %v72
    %v110 = vunpack.c.l.b16 %v73
    %v111 = vunpack.c.l.b16 %v74
    %v112 = vpack.c.b16 %v97, %v96
    %v113 = vpack.c.b16 %v99, %v98
    %v114 = vpack.c.b16 %v101, %v100
    %v115 = vpack.c.b16 %v103, %v102
    %v116 = vpack.c.b16 %v105, %v104
    %v117 = vpack.c.b16 %v107, %v106
    %v118 = vpack.c.b16 %v109, %v108
    %v119 = vpack.c.b16 %v111, %v110
    %128 = vmatpush.bf16.msra.mxu0 %v119
    %129 = vmatpush.bf16.msra.mxu0 %v118
    %130 = vmatpush.bf16.msra.mxu0 %v117
    %131 = vmatpush.bf16.msra.mxu0 %v116
    %132 = vmatpush.bf16.msra.mxu0 %v115
    %133 = vmatpush.bf16.msra.mxu0 %v114
    %134 = vmatpush.bf16.msra.mxu0 %v113
    %135 = vmatpush.bf16.msra.mxu0 %v112
    %136 = vmatmul.bf16.gmra.mxu0 %v76
    %v137 = vpop.f32.mrf.mxu0
    %v138 = vadd.f32 %v78, %v137
    %v139 = vpop.f32.mrf.mxu0
    %140 = vdwg.mxu0
    %v141 = vmax.f32 %v138, 0.0
    %v142 = vld [vmem:[%s5] sm:$0xf]
    %v143 = vld [vmem:[%s5 + $0x4] sm:$0xf]
    %v144 = vld [vmem:[%s5 + $0x8] sm:$0xf]
    %v145 = vld [vmem:[%s5 + $0xc] sm:$0xf]
    %v146 = vld [vmem:[%s5 + $0x10] sm:$0xf]
    %v147 = vld [vmem:[%s5 + $0x14] sm:$0xf]
    %v148 = vld [vmem:[%s5 + $0x18] sm:$0xf]
    %v149 = vld [vmem:[%s5 + $0x1c] sm:$0xf]
    %v150 = vld [vmem:[%s5 + $0x20] sm:$0xf]
    %v151 = vld [vmem:[%s5 + $0x24] sm:$0xf]
    %v152 = vld [vmem:[%s5 + $0x28] sm:$0xf]
    %v153 = vld [vmem:[%s5 + $0x2c] sm:$0xf]
    %v154 = vld [vmem:[%s5 + $0x30] sm:$0xf]
    %v155 = vld [vmem:[%s5 + $0x34] sm:$0xf]
    %v156 = vld [vmem:[%s5 + $0x38] sm:$0xf]
    %v157 = vld [vmem:[%s5 + $0x3c] sm:$0xf]
    %v158 = vld [vmem:[%s6] sm:$0x1]
    %v159 = vpack.c.bf16 %v141, %v141
    %v161 = vperm.slane %v158, 0
    %v179 = vunpack.c.l.b16 %v142
    %v180 = vunpack.c.l.b16 %v143
    %v181 = vunpack.c.l.b16 %v144
    %v182 = vunpack.c.l.b16 %v145
    %v183 = vunpack.c.l.b16 %v146
    %v184 = vunpack.c.l.b16 %v147
    %v185 = vunpack.c.l.b16 %v148
    %v186 = vunpack.c.l.b16 %v149
    %v187 = vunpack.c.l.b16 %v150
    %v188 = vunpack.c.l.b16 %v151
    %v189 = vunpack.c.l.b16 %v152
    %v190 = vunpack.c.l.b16 %v153
    %v191 = vunpack.c.l.b16 %v154
    %v192 = vunpack.c.l.b16 %v155
    %v193 = vunpack.c.l.b16 %v156
    %v194 = vunpack.c.l.b16 %v157
    %v195 = vpack.c.b16 %v180, %v179
    %v196 = vpack.c.b16 %v182, %v181
    %v197 = vpack.c.b16 %v184, %v183
    %v198 = vpack.c.b16 %v186, %v185
    %v199 = vpack.c.b16 %v188, %v187
    %v200 = vpack.c.b16 %v190, %v189
    %v201 = vpack.c.b16 %v192, %v191
    %v202 = vpack.c.b16 %v194, %v193
    %211 = vmatpush.bf16.msra.mxu0 %v202
    %212 = vmatpush.bf16.msra.mxu0 %v201
    %213 = vmatpush.bf16.msra.mxu0 %v200
    %214 = vmatpush.bf16.msra.mxu0 %v199
    %215 = vmatpush.bf16.msra.mxu0 %v198
    %216 = vmatpush.bf16.msra.mxu0 %v197
    %217 = vmatpush.bf16.msra.mxu0 %v196
    %218 = vmatpush.bf16.msra.mxu0 %v195
    %219 = vmatmul.bf16.gmra.mxu0 %v159
    %v220 = vpop.f32.mrf.mxu0
    %v221 = vadd.f32 %v161, %v220
    %v222 = vpop.f32.mrf.mxu0
    %223 = vdwg.mxu0
    %vm224 = vcmask 64512
    %225 = vst.msk [vmem:[#allocation2] sm:$0xff] %vm224, %v221
    %227 = vrot.lane.b32.xlu0 %v221, 120
    %v228 = vpop.permute.xlu0 %227
    %s230 = scalar_lea.vmem [#allocation2], 8
    %231 = vst.msk [vmem:[%s230] sm:$0xff] %vm224, %v228
    %232 = vrot.lane.b32.xlu0 %v221, 112
    %v233 = vpop.permute.xlu0 %232
    %s235 = scalar_lea.vmem [#allocation2], 16
    %236 = vst.msk [vmem:[%s235] sm:$0xff] %vm224, %v233
    %237 = vrot.lane.b32.xlu0 %v221, 104
    %v238 = vpop.permute.xlu0 %237
    %s240 = scalar_lea.vmem [#allocation2], 24
    %241 = vst.msk [vmem:[%s240] sm:$0xff] %vm224, %v238
    // Predicated region
    $region30: #{tpu_custom_call.1} parent=1 // pred_check
      _
    $region31: #{tpu_custom_call.1} parent=1 // pred_check_branch
      %243 = sbr.rel (0) target = $region33
    $region32: #{tpu_custom_call.1} parent=1 // pred_region
      %245 = vsyncadd [#allocation3], 0
      %s246 = sshll.u32 [#allocation2], 4
      %s247 = int_to_ptr.vmem [resolvable:$true] %s246
      %s248 = sshll.u32 %s7, 4
      %s249 = int_to_ptr.hbm [resolvable:$true] %s248
      %254 = dma.vmem_to_hbm [thread:$0]  %s247, 512, %s249, [#allocation3], 128, 128, 8
    $region33: #{tpu_custom_call.1} parent=1 // pred_fallthru
      _
    // Predicated region
    $region34: #{tpu_custom_call.1} parent=1 // pred_check
      _
    $region35: #{tpu_custom_call.1} parent=1 // pred_check_branch
      %256 = sbr.rel (0) target = $region37
    $region36: #{tpu_custom_call.1} parent=1 // pred_region
      %258 = dma.done [#allocation3], 512
    $region37: #{tpu_custom_call.1} parent=1 // pred_fallthru
      _
    %259 = vsyncpa [#allocation3], 1

// kernel: tpu_custom_call.1
$region0: #{tpu_custom_call.1}
  #allocation0 [shape = 'u32[]', space=smem, size = 0x4, offset = 0x4, fixed_abs, tag = 'smem constant byte address 0x4 - core index']
  #allocation1 [shape = 'u32[72,128]{1,0:T(1,128)}', space=vmem, size = 0x9000, scoped, tag = 'internal scratch']
  %s0 = inlined_call_operand.vmem [shape: bf16[8,16], index: 0, kind: input, shape index: {}]
  %s1 = inlined_call_operand.vmem [shape: bf16[16,128], index: 1, kind: input, shape index: {}]
  %s2 = inlined_call_operand.vmem [shape: f32[1,128], index: 2, kind: input, shape index: {}]
  %s3 = inlined_call_operand.vmem [shape: bf16[128,128], index: 3, kind: input, shape index: {}]
  %s4 = inlined_call_operand.vmem [shape: f32[1,128], index: 4, kind: input, shape index: {}]
  %s5 = inlined_call_operand.vmem [shape: bf16[128,32], index: 5, kind: input, shape index: {}]
  %s6 = inlined_call_operand.vmem [shape: f32[1,32], index: 6, kind: input, shape index: {}]
  %s7 = inlined_call_operand.hbm [shape: f32[4,8,8], index: 7, kind: output, shape index: {}]
  %s8 = sld [smem:[#allocation0]]
  $region38: #{tpu_custom_call.1} parent=0
    _
  %s10 = ssub.s32 1, %s8
  %s11 = scalar_select 0, %s10, %s8
  $region1: #{tpu_custom_call.1} parent=0
    #allocation2 [shape = 'u8[16384]{0}', space=vmem, size = 0x4000, scoped, tag = 'output window, operand 0, single buffered']
    #allocation3 [shape = 's32[1]{0}', space=sflag, size = 0x4, scoped, tag = 'scoped memory for tpu_custom_call.1']
    %12 = vsyncpa [#allocation3], 0
    // Predicated region
    $region2: #{tpu_custom_call.1} parent=1 // pred_check
      _
    $region3: #{tpu_custom_call.1} parent=1 // pred_check_branch
      %14 = sbr.rel (0) target = $region5
    $region4: #{tpu_custom_call.1} parent=1 // pred_region
      _
    $region5: #{tpu_custom_call.1} parent=1 // pred_fallthru
      _
    // Predicated region
    $region6: #{tpu_custom_call.1} parent=1 // pred_check
      _
    $region7: #{tpu_custom_call.1} parent=1 // pred_check_branch
      %16 = sbr.rel (0) target = $region9
    $region8: #{tpu_custom_call.1} parent=1 // pred_region
      _
    $region9: #{tpu_custom_call.1} parent=1 // pred_fallthru
      _
    // Predicated region
    $region10: #{tpu_custom_call.1} parent=1 // pred_check
      _
    $region11: #{tpu_custom_call.1} parent=1 // pred_check_branch
      %18 = sbr.rel (0) target = $region13
    $region12: #{tpu_custom_call.1} parent=1 // pred_region
      _
    $region13: #{tpu_custom_call.1} parent=1 // pred_fallthru
      _
    // Predicated region
    $region14: #{tpu_custom_call.1} parent=1 // pred_check
      _
    $region15: #{tpu_custom_call.1} parent=1 // pred_check_branch
      %20 = sbr.rel (0) target = $region17
    $region16: #{tpu_custom_call.1} parent=1 // pred_region
      _
    $region17: #{tpu_custom_call.1} parent=1 // pred_fallthru
      _
    // Predicated region
    $region18: #{tpu_custom_call.1} parent=1 // pred_check
      _
    $region19: #{tpu_custom_call.1} parent=1 // pred_check_branch
      %22 = sbr.rel (0) target = $region21
    $region20: #{tpu_custom_call.1} parent=1 // pred_region
      _
    $region21: #{tpu_custom_call.1} parent=1 // pred_fallthru
      _
    // Predicated region
    $region22: #{tpu_custom_call.1} parent=1 // pred_check
      _
    $region23: #{tpu_custom_call.1} parent=1 // pred_check_branch
      %24 = sbr.rel (0) target = $region25
    $region24: #{tpu_custom_call.1} parent=1 // pred_region
      _
    $region25: #{tpu_custom_call.1} parent=1 // pred_fallthru
      _
    // Predicated region
    $region26: #{tpu_custom_call.1} parent=1 // pred_check
      _
    $region27: #{tpu_custom_call.1} parent=1 // pred_check_branch
      %26 = sbr.rel (0) target = $region29
    $region28: #{tpu_custom_call.1} parent=1 // pred_region
      _
    $region29: #{tpu_custom_call.1} parent=1 // pred_fallthru
      _
    %v28 = vld [vmem:[%s0] sm:$0xf]
    %v29 = vld [vmem:[%s1] sm:$0xf]
    %v30 = vld [vmem:[%s1 + $0x4] sm:$0xf]
    %v31 = vld [vmem:[%s2] sm:$0x1]
    %v33 = vperm.slane %v31, 0
    %v37 = vunpack.c.l.b16 %v29
    %v38 = vunpack.c.l.b16 %v30
    %v39 = vpack.c.b16 %v38, %v37
    %vm41 = vcmask 130048
    %v43 = vsel %vm41, %v28, 0
    %45 = vmatpush.bf16.msra.mxu0 0
    %46 = vmatpush.bf16.msra.mxu0 0
    %47 = vmatpush.bf16.msra.mxu0 0
    %48 = vmatpush.bf16.msra.mxu0 0
    %49 = vmatpush.bf16.msra.mxu0 0
    %50 = vmatpush.bf16.msra.mxu0 0
    %51 = vmatpush.bf16.msra.mxu0 0
    %52 = vmatpush.bf16.msra.mxu0 %v39
    %53 = vmatmul.bf16.gmra.mxu0 %v43
    %v54 = vpop.f32.mrf.mxu0
    %v55 = vadd.f32 %v33, %v54
    %v56 = vpop.f32.mrf.mxu0
    %57 = vdwg.mxu0
    %v58 = vmax.f32 %v55, 0.0
    %v59 = vld [vmem:[%s3] sm:$0xf]
    %v60 = vld [vmem:[%s3 + $0x4] sm:$0xf]
    %v61 = vld [vmem:[%s3 + $0x8] sm:$0xf]
    %v62 = vld [vmem:[%s3 + $0xc] sm:$0xf]
    %v63 = vld [vmem:[%s3 + $0x10] sm:$0xf]
    %v64 = vld [vmem:[%s3 + $0x14] sm:$0xf]
    %v65 = vld [vmem:[%s3 + $0x18] sm:$0xf]
    %v66 = vld [vmem:[%s3 + $0x1c] sm:$0xf]
    %v67 = vld [vmem:[%s3 + $0x20] sm:$0xf]
    %v68 = vld [vmem:[%s3 + $0x24] sm:$0xf]
    %v69 = vld [vmem:[%s3 + $0x28] sm:$0xf]
    %v70 = vld [vmem:[%s3 + $0x2c] sm:$0xf]
    %v71 = vld [vmem:[%s3 + $0x30] sm:$0xf]
    %v72 = vld [vmem:[%s3 + $0x34] sm:$0xf]
    %v73 = vld [vmem:[%s3 + $0x38] sm:$0xf]
    %v74 = vld [vmem:[%s3 + $0x3c] sm:$0xf]
    %v75 = vld [vmem:[%s4] sm:$0x1]
    %v76 = vpack.c.bf16 %v58, %v58
    %v78 = vperm.slane %v75, 0
    %v96 = vunpack.c.l.b16 %v59
    %v97 = vunpack.c.l.b16 %v60
    %v98 = vunpack.c.l.b16 %v61
    %v99 = vunpack.c.l.b16 %v62
    %v100 = vunpack.c.l.b16 %v63
    %v101 = vunpack.c.l.b16 %v64
    %v102 = vunpack.c.l.b16 %v65
    %v103 = vunpack.c.l.b16 %v66
    %v104 = vunpack.c.l.b16 %v67
    %v105 = vunpack.c.l.b16 %v68
    %v106 = vunpack.c.l.b16 %v69
    %v107 = vunpack.c.l.b16 %v70
    %v108 = vunpack.c.l.b16 %v71
    %v109 = vunpack.c.l.b16 %v72
    %v110 = vunpack.c.l.b16 %v73
    %v111 = vunpack.c.l.b16 %v74
    %v112 = vpack.c.b16 %v97, %v96
    %v113 = vpack.c.b16 %v99, %v98
    %v114 = vpack.c.b16 %v101, %v100
    %v115 = vpack.c.b16 %v103, %v102
    %v116 = vpack.c.b16 %v105, %v104
    %v117 = vpack.c.b16 %v107, %v106
    %v118 = vpack.c.b16 %v109, %v108
    %v119 = vpack.c.b16 %v111, %v110
    %128 = vmatpush.bf16.msra.mxu0 %v119
    %129 = vmatpush.bf16.msra.mxu0 %v118
    %130 = vmatpush.bf16.msra.mxu0 %v117
    %131 = vmatpush.bf16.msra.mxu0 %v116
    %132 = vmatpush.bf16.msra.mxu0 %v115
    %133 = vmatpush.bf16.msra.mxu0 %v114
    %134 = vmatpush.bf16.msra.mxu0 %v113
    %135 = vmatpush.bf16.msra.mxu0 %v112
    %136 = vmatmul.bf16.gmra.mxu0 %v76
    %v137 = vpop.f32.mrf.mxu0
    %v138 = vadd.f32 %v78, %v137
    %v139 = vpop.f32.mrf.mxu0
    %140 = vdwg.mxu0
    %v141 = vmax.f32 %v138, 0.0
    %v142 = vld [vmem:[%s5] sm:$0xf]
    %v143 = vld [vmem:[%s5 + $0x4] sm:$0xf]
    %v144 = vld [vmem:[%s5 + $0x8] sm:$0xf]
    %v145 = vld [vmem:[%s5 + $0xc] sm:$0xf]
    %v146 = vld [vmem:[%s5 + $0x10] sm:$0xf]
    %v147 = vld [vmem:[%s5 + $0x14] sm:$0xf]
    %v148 = vld [vmem:[%s5 + $0x18] sm:$0xf]
    %v149 = vld [vmem:[%s5 + $0x1c] sm:$0xf]
    %v150 = vld [vmem:[%s5 + $0x20] sm:$0xf]
    %v151 = vld [vmem:[%s5 + $0x24] sm:$0xf]
    %v152 = vld [vmem:[%s5 + $0x28] sm:$0xf]
    %v153 = vld [vmem:[%s5 + $0x2c] sm:$0xf]
    %v154 = vld [vmem:[%s5 + $0x30] sm:$0xf]
    %v155 = vld [vmem:[%s5 + $0x34] sm:$0xf]
    %v156 = vld [vmem:[%s5 + $0x38] sm:$0xf]
    %v157 = vld [vmem:[%s5 + $0x3c] sm:$0xf]
    %v158 = vld [vmem:[%s6] sm:$0x1]
    %v159 = vpack.c.bf16 %v141, %v141
    %v161 = vperm.slane %v158, 0
    %v179 = vunpack.c.l.b16 %v142
    %v180 = vunpack.c.l.b16 %v143
    %v181 = vunpack.c.l.b16 %v144
    %v182 = vunpack.c.l.b16 %v145
    %v183 = vunpack.c.l.b16 %v146
    %v184 = vunpack.c.l.b16 %v147
    %v185 = vunpack.c.l.b16 %v148
    %v186 = vunpack.c.l.b16 %v149
    %v187 = vunpack.c.l.b16 %v150
    %v188 = vunpack.c.l.b16 %v151
    %v189 = vunpack.c.l.b16 %v152
    %v190 = vunpack.c.l.b16 %v153
    %v191 = vunpack.c.l.b16 %v154
    %v192 = vunpack.c.l.b16 %v155
    %v193 = vunpack.c.l.b16 %v156
    %v194 = vunpack.c.l.b16 %v157
    %v195 = vpack.c.b16 %v180, %v179
    %v196 = vpack.c.b16 %v182, %v181
    %v197 = vpack.c.b16 %v184, %v183
    %v198 = vpack.c.b16 %v186, %v185
    %v199 = vpack.c.b16 %v188, %v187
    %v200 = vpack.c.b16 %v190, %v189
    %v201 = vpack.c.b16 %v192, %v191
    %v202 = vpack.c.b16 %v194, %v193
    %211 = vmatpush.bf16.msra.mxu0 %v202
    %212 = vmatpush.bf16.msra.mxu0 %v201
    %213 = vmatpush.bf16.msra.mxu0 %v200
    %214 = vmatpush.bf16.msra.mxu0 %v199
    %215 = vmatpush.bf16.msra.mxu0 %v198
    %216 = vmatpush.bf16.msra.mxu0 %v197
    %217 = vmatpush.bf16.msra.mxu0 %v196
    %218 = vmatpush.bf16.msra.mxu0 %v195
    %219 = vmatmul.bf16.gmra.mxu0 %v159
    %v220 = vpop.f32.mrf.mxu0
    %v221 = vadd.f32 %v161, %v220
    %v222 = vpop.f32.mrf.mxu0
    %223 = vdwg.mxu0
    %vm224 = vcmask 64512
    %225 = vst.msk [vmem:[#allocation2] sm:$0xff] %vm224, %v221
    %227 = vrot.lane.b32.xlu0 %v221, 120
    %v228 = vpop.permute.xlu0 %227
    %s230 = scalar_lea.vmem [#allocation2], 8
    %231 = vst.msk [vmem:[%s230] sm:$0xff] %vm224, %v228
    %232 = vrot.lane.b32.xlu0 %v221, 112
    %v233 = vpop.permute.xlu0 %232
    %s235 = scalar_lea.vmem [#allocation2], 16
    %236 = vst.msk [vmem:[%s235] sm:$0xff] %vm224, %v233
    %237 = vrot.lane.b32.xlu0 %v221, 104
    %v238 = vpop.permute.xlu0 %237
    %s240 = scalar_lea.vmem [#allocation2], 24
    %241 = vst.msk [vmem:[%s240] sm:$0xff] %vm224, %v238
    // Predicated region
    $region30: #{tpu_custom_call.1} parent=1 // pred_check
      _
    $region31: #{tpu_custom_call.1} parent=1 // pred_check_branch
      %243 = sbr.rel (0) target = $region33
    $region32: #{tpu_custom_call.1} parent=1 // pred_region
      %245 = vsyncadd [#allocation3], 0
      %s246 = sshll.u32 [#allocation2], 4
      %s247 = int_to_ptr.vmem [resolvable:$true] %s246
      %s248 = sshll.u32 %s7, 4
      %s249 = int_to_ptr.hbm [resolvable:$true] %s248
      %254 = dma.vmem_to_hbm [thread:$0]  %s247, 512, %s249, [#allocation3], 128, 128, 8
    $region33: #{tpu_custom_call.1} parent=1 // pred_fallthru
      _
    // Predicated region
    $region34: #{tpu_custom_call.1} parent=1 // pred_check
      _
    $region35: #{tpu_custom_call.1} parent=1 // pred_check_branch
      %256 = sbr.rel (0) target = $region37
    $region36: #{tpu_custom_call.1} parent=1 // pred_region
      %258 = dma.done [#allocation3], 512
    $region37: #{tpu_custom_call.1} parent=1 // pred_fallthru
      _
    %259 = vsyncpa [#allocation3], 1

</llo_original>
